<compile_context>
chip_gen: v7x
topology: tpu7x:2x2x1
jax: 0.10.0
libtpu: 0.0.40
codegen_flags: <defaults>
</compile_context>

<pallas_src>
import jax
import jax.numpy as jnp
from jax.experimental import pallas as pl
from jax.experimental.pallas import tpu as pltpu


def _tpu_vmem_and_cores():
    """Best-effort query of per-core VMEM capacity and TensorCores per chip."""
    vmem = 64 * 1024 * 1024          # conservative default (v7x per-TC VMEM)
    cores = None
    try:
        info = pltpu.get_tpu_info()
        v = getattr(info, "vmem_capacity_bytes", None)
        if v:
            vmem = int(v)
        for attr in ("num_cores", "core_count", "cores_per_chip",
                     "num_tensorcores"):
            c = getattr(info, attr, None)
            if c:
                cores = int(c)
                break
    except Exception:
        pass
    if cores is None:
        # Heuristic: 64 MiB VMEM per core => v7x (2 TCs); 128 MiB => v5e/v6e (1 TC).
        cores = 2 if vmem <= 64 * 1024 * 1024 else 1
    return vmem, cores


def _pick_row_tile(R, bytes_per_row, budget, num_cores):
    """Row-tile heuristic.

    Largest tile that fits the VMEM block budget, is a multiple of the 8-row
    sublane granule (or the full R), prefers exact divisors of R (no padded
    edge block), and on multi-TensorCore chips prefers a block count divisible
    by the core count so no core idles through a remainder block.
    """
    gran = 8
    cap = budget // max(1, bytes_per_row)
    cap = min(max(cap, 1), R)
    if num_cores >= 2 and R >= num_cores * gran:
        cap = min(cap, pl.cdiv(R, num_cores))   # >= 1 row block per core
    if R <= gran or (R <= cap and R % gran != 0):
        return R                                # whole-dim block is always legal
    cap = max(gran, (cap // gran) * gran)
    if R % gran == 0:
        if num_cores >= 2:
            t = cap
            while t >= gran:                    # even split across cores
                if R % t == 0 and (R // t) % num_cores == 0:
                    return t
                t -= gran
        t = cap
        while t >= gran:                        # any exact divisor
            if R % t == 0:
                return t
            t -= gran
    return cap                                  # cdiv grid; Pallas masks the edge


def _spiking_softmax_kernel(x_ref, x0_ref, y0_ref, out_ref, xs_ref, ys_ref):
    # xs_ref / ys_ref block indices depend only on the row-block (outer) grid
    # axis, so they stay resident in VMEM across the (innermost) time axis and
    # are written back to HBM only once per row block.
    @pl.when(pl.program_id(1) == 0)
    def _init():
        xs_ref[...] = x0_ref[...]
        ys_ref[...] = y0_ref[...]

    # Running sum accumulates directly into the resident state block.
    xs_ref[...] += x_ref[...].astype(jnp.float32)
    x_acc = xs_ref[...]

    m = jnp.max(x_acc, axis=-1, keepdims=True)
    e = jnp.exp(x_acc - m)
    s = jnp.sum(e, axis=-1, keepdims=True)
    y = e / s                                   # exact; kernel is HBM-bound

    # Form the output before overwriting Y_prev.
    out_ref[...] = (y - ys_ref[...]).astype(out_ref.dtype)
    ys_ref[...] = y


def spiking_softmax_sequence(inputs, x_init=None, y_init=None):
    """Run T stateful spiking_softmax steps in one fused Pallas kernel.

    inputs: (T, ..., S), softmax over the last axis.
    x_init / y_init: optional initial state of shape (..., S); defaults to
    zeros (== the PyTorch module right after reset()).
    Returns (outputs (T, ..., S), x_state (..., S), y_state (..., S)).

    The initial-state buffers are donated (input_output_aliases) into the new
    state outputs.
    """
    T = inputs.shape[0]
    S = inputs.shape[-1]
    lead = inputs.shape[1:-1]
    R = 1
    for d in lead:
        R *= d

    x3 = inputs.reshape(T, R, S)
    x0 = (jnp.zeros((R, S), jnp.float32) if x_init is None
          else x_init.reshape(R, S).astype(jnp.float32))
    y0 = (jnp.zeros((R, S), jnp.float32) if y_init is None
          else y_init.reshape(R, S).astype(jnp.float32))

    vmem_cap, num_cores = _tpu_vmem_and_cores()
    vmem_limit = (vmem_cap * 3) // 4            # 96 MiB on v5e/v6e, 48 MiB on v7x
    block_budget = vmem_limit // 2              # 48 MiB / 24 MiB for block buffers

    # dtype-aware VMEM bytes per row of the tile (one softmax row of S elems):
    #   x block + out block at the real itemsize (double-buffered),
    #   4 f32 state blocks (double-buffered),
    #   ~3 block-sized f32 body temporaries (e, y, broadcasts).
    # The minor dim is lane-padded to a multiple of 128 in VMEM.
    itemsize = inputs.dtype.itemsize
    s_pad = ((S + 127) // 128) * 128
    bytes_per_row = s_pad * (2 * itemsize + 2 * itemsize + 4 * 2 * 4 + 3 * 4)

    tile = _pick_row_tile(R, bytes_per_row, block_budget, num_cores)
    grid = (pl.cdiv(R, tile), T)                # time innermost ("arbitrary")

    seq_spec = pl.BlockSpec((None, tile, S), lambda i, t: (t, i, 0))
    state_spec = pl.BlockSpec((tile, S), lambda i, t: (i, 0))

    out, x_new, y_new = pl.pallas_call(
        _spiking_softmax_kernel,
        out_shape=(
            jax.ShapeDtypeStruct((T, R, S), inputs.dtype),   # Y - Y_pre per step
            jax.ShapeDtypeStruct((R, S), jnp.float32),       # final X (running sum)
            jax.ShapeDtypeStruct((R, S), jnp.float32),       # final Y (new Y_pre)
        ),
        grid_spec=pltpu.PrefetchScalarGridSpec(
            num_scalar_prefetch=0,
            grid=grid,
            in_specs=(seq_spec, state_spec, state_spec),
            out_specs=(seq_spec, state_spec, state_spec),
        ),
        input_output_aliases={1: 1, 2: 2},      # x0 -> x_new, y0 -> y_new
        compiler_params=pltpu.CompilerParams(
            dimension_semantics=("parallel", "arbitrary"),
            vmem_limit_bytes=int(vmem_limit)),
    )(x3, x0, y0)

    return (out.reshape(inputs.shape),
            x_new.reshape(lead + (S,)),
            y_new.reshape(lead + (S,)))


def spiking_softmax_step(inp, x_prev=None, y_prev=None):
    """Single stateful forward step (matches one call of the PyTorch module)."""
    out, x_new, y_new = spiking_softmax_sequence(inp[None], x_prev, y_prev)
    return out[0], x_new, y_new


def reference_sequence(inputs, x_init=None, y_init=None):
    x0 = (jnp.zeros(inputs.shape[1:], jnp.float32) if x_init is None
          else x_init.astype(jnp.float32))
    y0 = (jnp.zeros(inputs.shape[1:], jnp.float32) if y_init is None
          else y_init.astype(jnp.float32))

    def step(carry, x_t):
        X, Y_pre = carry
        X = X + x_t.astype(jnp.float32)
        Y = jax.nn.softmax(X, axis=-1)
        return (X, Y), (Y - Y_pre).astype(x_t.dtype)

    (Xf, Yf), outs = jax.lax.scan(step, (x0, y0), inputs)
    return outs, Xf, Yf


if __name__ == "__main__":
    key = jax.random.PRNGKey(0)
    failures = []

    def check(name, got, want, tol):
        err = float(jnp.max(jnp.abs(got.astype(jnp.float32) -
                                    want.astype(jnp.float32))))
        if err > tol:
            failures.append(f"{name}: max abs err {err:.3e} > {tol}")

    TOL = 1e-5   # exact reciprocal -> tight tolerance

    # --- Case 1: attention-logit-like shape with small last dim (S=16). -----
    T, B, H, S = 4, 2, 4, 16
    k1, k2, k3, k4 = jax.random.split(key, 4)
    x_seq = jax.random.normal(k1, (T, B, H, S, S), jnp.float32)
    ref_out, ref_x, ref_y = reference_sequence(x_seq)

    out, xf, yf = spiking_softmax_sequence(x_seq)
    out = jax.block_until_ready(out)
    check("case1/out", out, ref_out, TOL)
    check("case1/x_state", xf, ref_x, TOL)
    check("case1/y_state", yf, ref_y, TOL)

    # --- Case 2: lane-dense last dim (S=128), nonzero initial state. --------
    T2, B2, H2, Q2, S2 = 3, 1, 2, 8, 128
    x_seq2 = jax.random.normal(k2, (T2, B2, H2, Q2, S2), jnp.float32)
    x_init = 0.5 * jax.random.normal(k3, (B2, H2, Q2, S2), jnp.float32)
    y_init = jax.nn.softmax(
        jax.random.normal(k4, (B2, H2, Q2, S2), jnp.float32), axis=-1)
    ref_out2, ref_x2, ref_y2 = reference_sequence(x_seq2, x_init, y_init)

    out2, xf2, yf2 = spiking_softmax_sequence(x_seq2, x_init, y_init)
    out2 = jax.block_until_ready(out2)
    check("case2/out", out2, ref_out2, TOL)
    check("case2/x_state", xf2, ref_x2, TOL)
    check("case2/y_state", yf2, ref_y2, TOL)

    # --- Case 3: per-step (stateful) API agrees with the fused sequence. ----
    x_state = y_state = None
    for t in range(2):
        o_t, x_state, y_state = spiking_softmax_step(x_seq[t], x_state, y_state)
        o_t = jax.block_until_ready(o_t)
        check(f"case3/out[{t}]", o_t, ref_out[t], TOL)

    if failures:
        for f in failures:
            print("FAIL", f)
    else:
        print("KERNEL_OK")
</pallas_src>

<mosaic_0001>
module attributes {stable_mosaic.version = 11 : i64} {
  func.func @_spiking_softmax_kernel(%arg0: i32, %arg1: i32, %arg2: memref<1x64x16xf32, #tpu.memory_space<vmem>>, %arg3: memref<64x16xf32, #tpu.memory_space<vmem>>, %arg4: memref<64x16xf32, #tpu.memory_space<vmem>>, %arg5: memref<1x64x16xf32, #tpu.memory_space<vmem>>, %arg6: memref<64x16xf32, #tpu.memory_space<vmem>>, %arg7: memref<64x16xf32, #tpu.memory_space<vmem>>) attributes {dimension_semantics = [#tpu.dimension_semantics<parallel>, #tpu.dimension_semantics<arbitrary>], iteration_bounds = array<i64: 2, 4>, scalar_prefetch = 0 : i64, scratch_operands = 0 : i64, tpu.core_type = #tpu.core_type<tc>, window_params = [{transform_indices = @transform_0, window_bounds = array<i64: 1, 64, 16>}, {transform_indices = @transform_1, window_bounds = array<i64: 64, 16>}, {transform_indices = @transform_2, window_bounds = array<i64: 64, 16>}, {transform_indices = @transform_3, window_bounds = array<i64: 1, 64, 16>}, {transform_indices = @transform_4, window_bounds = array<i64: 64, 16>}, {transform_indices = @transform_5, window_bounds = array<i64: 64, 16>}]} {
    %c0_i32 = arith.constant 0 : i32
    %0 = arith.cmpi eq, %arg1, %c0_i32 : i32
    %1 = arith.extui %0 : i1 to i32
    %c0_i32_0 = arith.constant 0 : i32
    %2 = arith.cmpi ne, %1, %c0_i32_0 : i32
    scf.if %2 {
      %c0_17 = arith.constant 0 : index
      %c0_18 = arith.constant 0 : index
      %24 = vector.load %arg3[%c0_17, %c0_18] : memref<64x16xf32, #tpu.memory_space<vmem>>, vector<64x16xf32>
      %c0_19 = arith.constant 0 : index
      %c0_20 = arith.constant 0 : index
      %25 = vector.load %arg6[%c0_19, %c0_20] : memref<64x16xf32, #tpu.memory_space<vmem>>, vector<64x16xf32>
      tpu.vector_store %arg6[%c0_19, %c0_20], %24 {strides = array<i32>} : memref<64x16xf32, #tpu.memory_space<vmem>>, vector<64x16xf32>,
      %c0_21 = arith.constant 0 : index
      %c0_22 = arith.constant 0 : index
      %26 = vector.load %arg4[%c0_21, %c0_22] : memref<64x16xf32, #tpu.memory_space<vmem>>, vector<64x16xf32>
      %c0_23 = arith.constant 0 : index
      %c0_24 = arith.constant 0 : index
      %27 = vector.load %arg7[%c0_23, %c0_24] : memref<64x16xf32, #tpu.memory_space<vmem>>, vector<64x16xf32>
      tpu.vector_store %arg7[%c0_23, %c0_24], %26 {strides = array<i32>} : memref<64x16xf32, #tpu.memory_space<vmem>>, vector<64x16xf32>,
    } else {
    }
    %c0 = arith.constant 0 : index
    %c0_1 = arith.constant 0 : index
    %3 = vector.load %arg6[%c0, %c0_1] : memref<64x16xf32, #tpu.memory_space<vmem>>, vector<64x16xf32>
    %c0_2 = arith.constant 0 : index
    %c0_3 = arith.constant 0 : index
    %c0_4 = arith.constant 0 : index
    %4 = vector.load %arg2[%c0_2, %c0_3, %c0_4] : memref<1x64x16xf32, #tpu.memory_space<vmem>>, vector<1x64x16xf32>
    %5 = vector.shape_cast %4 : vector<1x64x16xf32> to vector<64x16xf32>
    %6 = arith.addf %3, %5 : vector<64x16xf32>
    %c0_5 = arith.constant 0 : index
    %c0_6 = arith.constant 0 : index
    %7 = vector.load %arg6[%c0_5, %c0_6] : memref<64x16xf32, #tpu.memory_space<vmem>>, vector<64x16xf32>
    tpu.vector_store %arg6[%c0_5, %c0_6], %6 {strides = array<i32>} : memref<64x16xf32, #tpu.memory_space<vmem>>, vector<64x16xf32>,
    %c0_7 = arith.constant 0 : index
    %c0_8 = arith.constant 0 : index
    %8 = vector.load %arg6[%c0_7, %c0_8] : memref<64x16xf32, #tpu.memory_space<vmem>>, vector<64x16xf32>
    %cst = arith.constant dense<0xFF800000> : vector<64xf32>
    %9 = vector.multi_reduction <maximumf>, %8, %cst [1] : vector<64x16xf32> to vector<64xf32>
    %10 = vector.shape_cast %9 : vector<64xf32> to vector<64x1xf32>
    %11 = vector.broadcast %10 : vector<64x1xf32> to vector<64x16xf32>
    %12 = arith.subf %8, %11 : vector<64x16xf32>
    %13 = math.exp %12 : vector<64x16xf32>
    %cst_9 = arith.constant dense<0.000000e+00> : vector<64xf32>
    %14 = vector.multi_reduction <add>, %13, %cst_9 [1] : vector<64x16xf32> to vector<64xf32>
    %15 = vector.shape_cast %14 : vector<64xf32> to vector<64x1xf32>
    %16 = vector.broadcast %15 : vector<64x1xf32> to vector<64x16xf32>
    %17 = arith.divf %13, %16 : vector<64x16xf32>
    %c0_10 = arith.constant 0 : index
    %c0_11 = arith.constant 0 : index
    %18 = vector.load %arg7[%c0_10, %c0_11] : memref<64x16xf32, #tpu.memory_space<vmem>>, vector<64x16xf32>
    %19 = arith.subf %17, %18 : vector<64x16xf32>
    %c0_12 = arith.constant 0 : index
    %c0_13 = arith.constant 0 : index
    %c0_14 = arith.constant 0 : index
    %20 = vector.load %arg5[%c0_12, %c0_13, %c0_14] : memref<1x64x16xf32, #tpu.memory_space<vmem>>, vector<1x64x16xf32>
    %21 = vector.shape_cast %20 : vector<1x64x16xf32> to vector<64x16xf32>
    %22 = vector.shape_cast %19 : vector<64x16xf32> to vector<1x64x16xf32>
    tpu.vector_store %arg5[%c0_12, %c0_13, %c0_14], %22 {strides = array<i32>} : memref<1x64x16xf32, #tpu.memory_space<vmem>>, vector<1x64x16xf32>,
    %c0_15 = arith.constant 0 : index
    %c0_16 = arith.constant 0 : index
    %23 = vector.load %arg7[%c0_15, %c0_16] : memref<64x16xf32, #tpu.memory_space<vmem>>, vector<64x16xf32>
    tpu.vector_store %arg7[%c0_15, %c0_16], %17 {strides = array<i32>} : memref<64x16xf32, #tpu.memory_space<vmem>>, vector<64x16xf32>,
    return
  }
  func.func @transform_0(%arg0: i32, %arg1: i32) -> (i32, i32, i32) {
    %c0_i32 = arith.constant 0 : i32
    %c0_i32_0 = arith.constant 0 : i32
    return %arg1, %arg0, %c0_i32 : i32, i32, i32
  }
  func.func @transform_1(%arg0: i32, %arg1: i32) -> (i32, i32) {
    %c0_i32 = arith.constant 0 : i32
    %c0_i32_0 = arith.constant 0 : i32
    return %arg0, %c0_i32 : i32, i32
  }
  func.func @transform_2(%arg0: i32, %arg1: i32) -> (i32, i32) {
    %c0_i32 = arith.constant 0 : i32
    %c0_i32_0 = arith.constant 0 : i32
    return %arg0, %c0_i32 : i32, i32
  }
  func.func @transform_3(%arg0: i32, %arg1: i32) -> (i32, i32, i32) {
    %c0_i32 = arith.constant 0 : i32
    %c0_i32_0 = arith.constant 0 : i32
    return %arg1, %arg0, %c0_i32 : i32, i32, i32
  }
  func.func @transform_4(%arg0: i32, %arg1: i32) -> (i32, i32) {
    %c0_i32 = arith.constant 0 : i32
    %c0_i32_0 = arith.constant 0 : i32
    return %arg0, %c0_i32 : i32, i32
  }
  func.func @transform_5(%arg0: i32, %arg1: i32) -> (i32, i32) {
    %c0_i32 = arith.constant 0 : i32
    %c0_i32_0 = arith.constant 0 : i32
    return %arg0, %c0_i32 : i32, i32
  }
}

</mosaic_0001>

<llo_original>
// kernel: tpu_custom_call.1
$region0: #{tpu_custom_call.1}
  #allocation0 [shape = 'u32[]', space=smem, size = 0x4, offset = 0x4, fixed_abs, tag = 'smem constant byte address 0x4 - core index']
  #allocation1 [shape = 'u32[144,128]{1,0:T(1,128)}', space=vmem, size = 0x12000, scoped, tag = 'internal scratch']
  %s0 = inlined_call_operand.vmem [shape: f32[4,128,16], index: 0, kind: input, shape index: {}]
  %s1 = inlined_call_operand.vmem [shape: f32[128,16], index: 1, kind: input, shape index: {}, may-alias: {1,4}]
  %s2 = inlined_call_operand.vmem [shape: f32[128,16], index: 2, kind: input, shape index: {}, may-alias: {2,5}]
  %s3 = inlined_call_operand.vmem [shape: f32[4,128,16], index: 3, kind: output, shape index: {0}]
  %s4 = inlined_call_operand.vmem [shape: f32[128,16], index: 4, kind: output, shape index: {1}, may-alias: {1,4}]
  %s5 = inlined_call_operand.vmem [shape: f32[128,16], index: 5, kind: output, shape index: {2}, may-alias: {2,5}]
  %6 = xla_tuple %s3, %s4, %s5
  %s7 = sld [smem:[#allocation0]]
  $region65: #{tpu_custom_call.1} parent=0
    _
  %s9 = ssub.s32 1, %s7
  %s10 = scalar_select 0, %s9, %s7
  loop: start=0, step=1, limit=10
  $region2: #{tpu_custom_call.1} parent=0 // loop_pre_header
    _
  $region3: #{tpu_custom_call.1} parent=0 // loop_header
    %s12 = sphi 0, %s16
    %p13 = scmp.ge.s32.totalorder %s12, 10
    %s19 = sphi 0, %s31
    %s20 = sphi 0, %s27
    %s21 = sphi 0, %s19
    %s22 = sphi 0, %s20
    %s23 = sphi 0, %s21
    %s24 = sphi 0, %s22
    %s36 = sphi 0, %s38
    %s39 = sphi 0, %s36
    %s40 = sphi 0, %s39
    %s56 = sphi 0, %s40
    %s62 = sphi 0, %s64
    %s65 = sphi 0, %s62
    %s66 = sphi 0, %s65
    %s82 = sphi 0, %s66
    %s88 = sphi 0, %s90
    %s91 = sphi 0, %s88
    %s92 = sphi 0, %s91
    %s108 = sphi 0, %s92
    %s116 = sphi 0, %s118
    %s119 = sphi 0, %s116
    %s120 = sphi 0, %s119
    %s136 = sphi 0, %s120
    %s142 = sphi 0, %s144
    %s145 = sphi 0, %s142
    %s146 = sphi 0, %s145
    %s162 = sphi 0, %s146
    %s168 = sphi 0, %s170
    %s171 = sphi 0, %s168
    %s172 = sphi 0, %s171
    %s188 = sphi 0, %s172
  $region4: #{tpu_custom_call.1} parent=0 // loop_header_branch
    %15 = sbr.rel (%p13) target = $region8
  $region5: #{tpu_custom_call.1} parent=0 // loop_body
    %s17 = ssub.s32 %s12, 1
    %s18 = ssub.s32 %s12, 2
    %s25 = sadd.s32 1, %s20
    %p26 = scmp.ge.s32.totalorder %s25, 4
    %s27 = scalar_select %p26, 0, %s25
    %s28 = sadd.s32 1, %s19
    %s29 = scalar_select %p26, %s28, %s19
    %p30 = scmp.ge.s32.totalorder %s29, 2
    %s31 = scalar_select %p30, 0, %s29
    %s32 = ssub.s32 %s20, %s27
    %s33 = ssub.s32 %s19, %s31
    %s34 = sor.u32 %s32, %s33
    %p35 = scmp.eq.s32.totalorder %s34, 0
    %s37 = sadd.s32 %s36, 1
    %s38 = scalar_select %p35, %s36, %s37
    %p41 = pneg %p35
    %p42 = scmp.eq.s32.totalorder %s12, 7
    %p43 = por %p41, %p42
    %p44 = scmp.ne.s32.totalorder %s36, %s39
    %p45 = scmp.eq.s32.totalorder %s12, 0
    %p46 = por %p44, %p45
    %p47 = scmp.ne.s32.totalorder %s36, %s39
    %p48 = scmp.eq.s32.totalorder %s17, 7
    %p49 = por %p47, %p48
    %p50 = scmp.ne.s32.totalorder %s39, %s40
    %p51 = scmp.eq.s32.totalorder %s17, 0
    %p52 = por %p50, %p51
    %p53 = scmp.ne.s32.totalorder %s39, %s40
    %p54 = scmp.eq.s32.totalorder %s18, 7
    %p55 = por %p53, %p54
    %p57 = scmp.ne.s32.totalorder %s40, %s56
    %p58 = scmp.eq.s32.totalorder %s18, 0
    %p59 = por %p57, %p58
    %s60 = ssub.s32 %s19, %s31
    %p61 = scmp.eq.s32.totalorder %s60, 0
    %s63 = sadd.s32 %s62, 1
    %s64 = scalar_select %p61, %s62, %s63
    %p67 = pneg %p61
    %p68 = scmp.eq.s32.totalorder %s12, 7
    %p69 = por %p67, %p68
    %p70 = scmp.ne.s32.totalorder %s62, %s65
    %p71 = scmp.eq.s32.totalorder %s12, 0
    %p72 = por %p70, %p71
    %p73 = scmp.ne.s32.totalorder %s62, %s65
    %p74 = scmp.eq.s32.totalorder %s17, 7
    %p75 = por %p73, %p74
    %p76 = scmp.ne.s32.totalorder %s65, %s66
    %p77 = scmp.eq.s32.totalorder %s17, 0
    %p78 = por %p76, %p77
    %p79 = scmp.ne.s32.totalorder %s65, %s66
    %p80 = scmp.eq.s32.totalorder %s18, 7
    %p81 = por %p79, %p80
    %p83 = scmp.ne.s32.totalorder %s66, %s82
    %p84 = scmp.eq.s32.totalorder %s18, 0
    %p85 = por %p83, %p84
    %s86 = ssub.s32 %s19, %s31
    %p87 = scmp.eq.s32.totalorder %s86, 0
    %s89 = sadd.s32 %s88, 1
    %s90 = scalar_select %p87, %s88, %s89
    %p93 = pneg %p87
    %p94 = scmp.eq.s32.totalorder %s12, 7
    %p95 = por %p93, %p94
    %p96 = scmp.ne.s32.totalorder %s88, %s91
    %p97 = scmp.eq.s32.totalorder %s12, 0
    %p98 = por %p96, %p97
    %p99 = scmp.ne.s32.totalorder %s88, %s91
    %p100 = scmp.eq.s32.totalorder %s17, 7
    %p101 = por %p99, %p100
    %p102 = scmp.ne.s32.totalorder %s91, %s92
    %p103 = scmp.eq.s32.totalorder %s17, 0
    %p104 = por %p102, %p103
    %p105 = scmp.ne.s32.totalorder %s91, %s92
    %p106 = scmp.eq.s32.totalorder %s18, 7
    %p107 = por %p105, %p106
    %p109 = scmp.ne.s32.totalorder %s92, %s108
    %p110 = scmp.eq.s32.totalorder %s18, 0
    %p111 = por %p109, %p110
    %s112 = ssub.s32 %s20, %s27
    %s113 = ssub.s32 %s19, %s31
    %s114 = sor.u32 %s112, %s113
    %p115 = scmp.eq.s32.totalorder %s114, 0
    %s117 = sadd.s32 %s116, 1
    %s118 = scalar_select %p115, %s116, %s117
    %p121 = pneg %p115
    %p122 = scmp.eq.s32.totalorder %s12, 7
    %p123 = por %p121, %p122
    %p124 = scmp.ne.s32.totalorder %s116, %s119
    %p125 = scmp.eq.s32.totalorder %s12, 0
    %p126 = por %p124, %p125
    %p127 = scmp.ne.s32.totalorder %s116, %s119
    %p128 = scmp.eq.s32.totalorder %s17, 7
    %p129 = por %p127, %p128
    %p130 = scmp.ne.s32.totalorder %s119, %s120
    %p131 = scmp.eq.s32.totalorder %s17, 0
    %p132 = por %p130, %p131
    %p133 = scmp.ne.s32.totalorder %s119, %s120
    %p134 = scmp.eq.s32.totalorder %s18, 7
    %p135 = por %p133, %p134
    %p137 = scmp.ne.s32.totalorder %s120, %s136
    %p138 = scmp.eq.s32.totalorder %s18, 0
    %p139 = por %p137, %p138
    %s140 = ssub.s32 %s19, %s31
    %p141 = scmp.eq.s32.totalorder %s140, 0
    %s143 = sadd.s32 %s142, 1
    %s144 = scalar_select %p141, %s142, %s143
    %p147 = pneg %p141
    %p148 = scmp.eq.s32.totalorder %s12, 7
    %p149 = por %p147, %p148
    %p150 = scmp.ne.s32.totalorder %s142, %s145
    %p151 = scmp.eq.s32.totalorder %s12, 0
    %p152 = por %p150, %p151
    %p153 = scmp.ne.s32.totalorder %s142, %s145
    %p154 = scmp.eq.s32.totalorder %s17, 7
    %p155 = por %p153, %p154
    %p156 = scmp.ne.s32.totalorder %s145, %s146
    %p157 = scmp.eq.s32.totalorder %s17, 0
    %p158 = por %p156, %p157
    %p159 = scmp.ne.s32.totalorder %s145, %s146
    %p160 = scmp.eq.s32.totalorder %s18, 7
    %p161 = por %p159, %p160
    %p163 = scmp.ne.s32.totalorder %s146, %s162
    %p164 = scmp.eq.s32.totalorder %s18, 0
    %p165 = por %p163, %p164
    %s166 = ssub.s32 %s19, %s31
    %p167 = scmp.eq.s32.totalorder %s166, 0
    %s169 = sadd.s32 %s168, 1
    %s170 = scalar_select %p167, %s168, %s169
    %p173 = pneg %p167
    %p174 = scmp.eq.s32.totalorder %s12, 7
    %p175 = por %p173, %p174
    %p176 = scmp.ne.s32.totalorder %s168, %s171
    %p177 = scmp.eq.s32.totalorder %s12, 0
    %p178 = por %p176, %p177
    %p179 = scmp.ne.s32.totalorder %s168, %s171
    %p180 = scmp.eq.s32.totalorder %s17, 7
    %p181 = por %p179, %p180
    %p182 = scmp.ne.s32.totalorder %s171, %s172
    %p183 = scmp.eq.s32.totalorder %s17, 0
    %p184 = por %p182, %p183
    %p185 = scmp.ne.s32.totalorder %s171, %s172
    %p186 = scmp.eq.s32.totalorder %s18, 7
    %p187 = por %p185, %p186
    %p189 = scmp.ne.s32.totalorder %s172, %s188
    %p190 = scmp.eq.s32.totalorder %s18, 0
    %p191 = por %p189, %p190
    %p192 = scmp.le.s32.totalorder 1, %s12
    %p193 = scmp.lt.s32.totalorder %s12, 9
    %p194 = pnand %p192, %p193
    %p195 = pneg %p194
    // Predicated region
    $region9: #{tpu_custom_call.1} parent=5 // pred_check
      _
    $region10: #{tpu_custom_call.1} parent=5 // pred_check_branch
      %197 = sbr.rel (%p194) target = $region12
    $region11: #{tpu_custom_call.1} parent=5 // pred_region
      %s198 = ssub.s32 %s12, 1
    $region12: #{tpu_custom_call.1} parent=5 // pred_fallthru
      _
    %p199 = scmp.lt.s32.totalorder %s12, 8
    // Predicated region
    $region13: #{tpu_custom_call.1} parent=5 // pred_check
      %p200 = pneg %p199
    $region14: #{tpu_custom_call.1} parent=5 // pred_check_branch
      %202 = sbr.rel (%p200) target = $region16
    $region15: #{tpu_custom_call.1} parent=5 // pred_region
      // Predicated region
      $region17: #{tpu_custom_call.1} parent=15 // pred_check
        %p203 = pneg %p46
      $region18: #{tpu_custom_call.1} parent=15 // pred_check_branch
        %205 = sbr.rel (%p203) target = $region20
      $region19: #{tpu_custom_call.1} parent=15 // pred_region
        %s206 = smul.u32 8, %s19
        %p207 = scmp.lt.s32.totalorder %s20, 3
        %s208 = scalar_select %p207, %s20, 3
        %p209 = scmp.lt.s32.totalorder %s206, 15
        %s210 = scalar_select %p209, %s206, 15
        %s211 = smul.addr %s208, 16
        %s212 = sadd.s32 %s210, %s211
        %s213 = smul.addr %s212, 8
        %s214 = scalar_lea.vmem %s0, %s213
        %s215 = smul.u32 8, %s19
      $region20: #{tpu_custom_call.1} parent=15 // pred_fallthru
        _
      // Predicated region
      $region21: #{tpu_custom_call.1} parent=15 // pred_check
        %p216 = pneg %p72
      $region22: #{tpu_custom_call.1} parent=15 // pred_check_branch
        %218 = sbr.rel (%p216) target = $region24
      $region23: #{tpu_custom_call.1} parent=15 // pred_region
        %s219 = smul.u32 8, %s19
        %p220 = scmp.lt.s32.totalorder %s219, 15
        %s221 = scalar_select %p220, %s219, 15
        %s222 = smul.addr %s221, 8
        %s223 = scalar_lea.vmem %s1, %s222
        %s224 = smul.u32 8, %s19
      $region24: #{tpu_custom_call.1} parent=15 // pred_fallthru
        _
      // Predicated region
      $region25: #{tpu_custom_call.1} parent=15 // pred_check
        %p225 = pneg %p98
      $region26: #{tpu_custom_call.1} parent=15 // pred_check_branch
        %227 = sbr.rel (%p225) target = $region28
      $region27: #{tpu_custom_call.1} parent=15 // pred_region
        %s228 = smul.u32 8, %s19
        %p229 = scmp.lt.s32.totalorder %s228, 15
        %s230 = scalar_select %p229, %s228, 15
        %s231 = smul.addr %s230, 8
        %s232 = scalar_lea.vmem %s2, %s231
        %s233 = smul.u32 8, %s19
      $region28: #{tpu_custom_call.1} parent=15 // pred_fallthru
        _
    $region16: #{tpu_custom_call.1} parent=5 // pred_fallthru
      _
    %p234 = scmp.le.s32.totalorder 1, %s12
    %p235 = scmp.lt.s32.totalorder %s12, 9
    %p236 = pnand %p234, %p235
    %p237 = pneg %p236
    // Predicated region
    $region29: #{tpu_custom_call.1} parent=5 // pred_check
      _
    $region30: #{tpu_custom_call.1} parent=5 // pred_check_branch
      %239 = sbr.rel (%p236) target = $region32
    $region31: #{tpu_custom_call.1} parent=5 // pred_region
      %s240 = ssub.s32 %s12, 1
      %s241 = smul.u32 8, %s21
      %p242 = scmp.lt.s32.totalorder %s22, 3
      %s243 = scalar_select %p242, %s22, 3
      %p244 = scmp.lt.s32.totalorder %s241, 15
      %s245 = scalar_select %p244, %s241, 15
      %s246 = smul.addr %s243, 16
      %s247 = sadd.s32 %s245, %s246
      %s248 = smul.addr %s247, 8
      %s249 = scalar_lea.vmem %s0, %s248
      %p250 = pneg %p52
      %p251 = pneg %p49
      %s252 = smul.u32 8, %s21
      %p253 = scmp.lt.s32.totalorder %s252, 15
      %s254 = scalar_select %p253, %s252, 15
      %s255 = smul.addr %s254, 8
      %s256 = scalar_lea.vmem %s1, %s255
      %p257 = pneg %p78
      %p258 = pneg %p75
      %s259 = smul.u32 8, %s21
      %p260 = scmp.lt.s32.totalorder %s259, 15
      %s261 = scalar_select %p260, %s259, 15
      %s262 = smul.addr %s261, 8
      %s263 = scalar_lea.vmem %s2, %s262
      %p264 = pneg %p104
      %p265 = pneg %p101
      %p266 = pneg %p132
      %p267 = pneg %p129
      %s268 = smul.u32 8, %s21
      %p269 = scmp.lt.s32.totalorder %s22, 3
      %s270 = scalar_select %p269, %s22, 3
      %p271 = scmp.lt.s32.totalorder %s268, 15
      %s272 = scalar_select %p271, %s268, 15
      %s273 = smul.addr %s270, 16
      %s274 = sadd.s32 %s272, %s273
      %s275 = smul.addr %s274, 8
      %s276 = scalar_lea.vmem %s3, %s275
      %p277 = pneg %p158
      %p278 = pneg %p155
      %s279 = smul.u32 8, %s21
      %p280 = scmp.lt.s32.totalorder %s279, 15
      %s281 = scalar_select %p280, %s279, 15
      %s282 = smul.addr %s281, 8
      %s283 = scalar_lea.vmem %s4, %s282
      %p284 = pneg %p184
      %p285 = pneg %p181
      %s286 = smul.u32 8, %s21
      %p287 = scmp.lt.s32.totalorder %s286, 15
      %s288 = scalar_select %p287, %s286, 15
      %s289 = smul.addr %s288, 8
      %s290 = scalar_lea.vmem %s5, %s289
      %s291 = smul.u32 8, %s21
      %p292 = scmp.lt.s32.totalorder %s22, 3
      %s293 = scalar_select %p292, %s22, 3
      %p294 = scmp.lt.s32.totalorder %s291, 15
      %s295 = scalar_select %p294, %s291, 15
      %s296 = smul.addr %s293, 16
      %s297 = sadd.s32 %s295, %s296
      %s298 = smul.addr %s297, 8
      %s299 = scalar_lea.vmem %s0, %s298
      %s300 = smul.u32 8, %s21
      %s301 = smul.u32 8, %s21
      %p302 = scmp.lt.s32.totalorder %s301, 15
      %s303 = scalar_select %p302, %s301, 15
      %s304 = smul.addr %s303, 8
      %s305 = scalar_lea.vmem %s1, %s304
      %s306 = smul.u32 8, %s21
      %s307 = smul.u32 8, %s21
      %p308 = scmp.lt.s32.totalorder %s307, 15
      %s309 = scalar_select %p308, %s307, 15
      %s310 = smul.addr %s309, 8
      %s311 = scalar_lea.vmem %s2, %s310
      %s312 = smul.u32 8, %s21
      %s313 = smul.u32 8, %s21
      %p314 = scmp.lt.s32.totalorder %s22, 3
      %s315 = scalar_select %p314, %s22, 3
      %p316 = scmp.lt.s32.totalorder %s313, 15
      %s317 = scalar_select %p316, %s313, 15
      %s318 = smul.addr %s315, 16
      %s319 = sadd.s32 %s317, %s318
      %s320 = smul.addr %s319, 8
      %s321 = scalar_lea.vmem %s3, %s320
      %s322 = smul.u32 8, %s21
      %s323 = smul.u32 8, %s21
      %p324 = scmp.lt.s32.totalorder %s323, 15
      %s325 = scalar_select %p324, %s323, 15
      %s326 = smul.addr %s325, 8
      %s327 = scalar_lea.vmem %s4, %s326
      %s328 = smul.u32 8, %s21
      %s329 = smul.u32 8, %s21
      %p330 = scmp.lt.s32.totalorder %s329, 15
      %s331 = scalar_select %p330, %s329, 15
      %s332 = smul.addr %s331, 8
      %s333 = scalar_lea.vmem %s5, %s332
      %s334 = smul.u32 8, %s21
      %p335 = scmp.eq.s32.totalorder %s22, 0
      // Predicated region
      $region33: #{tpu_custom_call.1} parent=31 // pred_check
        %p336 = pneg %p335
      $region34: #{tpu_custom_call.1} parent=31 // pred_check_branch
        %338 = sbr.rel (%p336) target = $region36
      $region35: #{tpu_custom_call.1} parent=31 // pred_region
        %v339 = vld [vmem:[%s305] sm:$0xff]
        %v340 = vld [vmem:[%s305 + $0x8] sm:$0xff]
        %v341 = vld [vmem:[%s305 + $0x10] sm:$0xff]
        %v342 = vld [vmem:[%s305 + $0x18] sm:$0xff]
        %v343 = vld [vmem:[%s305 + $0x20] sm:$0xff]
        %v344 = vld [vmem:[%s305 + $0x28] sm:$0xff]
        %v345 = vld [vmem:[%s305 + $0x30] sm:$0xff]
        %v346 = vld [vmem:[%s305 + $0x38] sm:$0xff]
        %vm347 = vcmask 130048
        %348 = vst.msk [vmem:[%s327] sm:$0xff] %vm347, %v339
        %349 = vst.msk [vmem:[%s327 + $0x8] sm:$0xff] %vm347, %v340
        %350 = vst.msk [vmem:[%s327 + $0x10] sm:$0xff] %vm347, %v341
        %351 = vst.msk [vmem:[%s327 + $0x18] sm:$0xff] %vm347, %v342
        %352 = vst.msk [vmem:[%s327 + $0x20] sm:$0xff] %vm347, %v343
        %353 = vst.msk [vmem:[%s327 + $0x28] sm:$0xff] %vm347, %v344
        %354 = vst.msk [vmem:[%s327 + $0x30] sm:$0xff] %vm347, %v345
        %355 = vst.msk [vmem:[%s327 + $0x38] sm:$0xff] %vm347, %v346
        %v356 = vld [vmem:[%s311] sm:$0xff]
        %v357 = vld [vmem:[%s311 + $0x8] sm:$0xff]
        %v358 = vld [vmem:[%s311 + $0x10] sm:$0xff]
        %v359 = vld [vmem:[%s311 + $0x18] sm:$0xff]
        %v360 = vld [vmem:[%s311 + $0x20] sm:$0xff]
        %v361 = vld [vmem:[%s311 + $0x28] sm:$0xff]
        %v362 = vld [vmem:[%s311 + $0x30] sm:$0xff]
        %v363 = vld [vmem:[%s311 + $0x38] sm:$0xff]
        %364 = vst.msk [vmem:[%s333] sm:$0xff] %vm347, %v356
        %365 = vst.msk [vmem:[%s333 + $0x8] sm:$0xff] %vm347, %v357
        %366 = vst.msk [vmem:[%s333 + $0x10] sm:$0xff] %vm347, %v358
        %367 = vst.msk [vmem:[%s333 + $0x18] sm:$0xff] %vm347, %v359
        %368 = vst.msk [vmem:[%s333 + $0x20] sm:$0xff] %vm347, %v360
        %369 = vst.msk [vmem:[%s333 + $0x28] sm:$0xff] %vm347, %v361
        %370 = vst.msk [vmem:[%s333 + $0x30] sm:$0xff] %vm347, %v362
        %371 = vst.msk [vmem:[%s333 + $0x38] sm:$0xff] %vm347, %v363
      $region36: #{tpu_custom_call.1} parent=31 // pred_fallthru
        _
      %v372 = vld [vmem:[%s327] sm:$0xff]
      %v373 = vld [vmem:[%s327 + $0x8] sm:$0xff]
      %v374 = vld [vmem:[%s327 + $0x10] sm:$0xff]
      %v375 = vld [vmem:[%s327 + $0x18] sm:$0xff]
      %v376 = vld [vmem:[%s327 + $0x20] sm:$0xff]
      %v377 = vld [vmem:[%s327 + $0x28] sm:$0xff]
      %v378 = vld [vmem:[%s327 + $0x30] sm:$0xff]
      %v379 = vld [vmem:[%s327 + $0x38] sm:$0xff]
      %v380 = vld [vmem:[%s299] sm:$0xff]
      %v381 = vld [vmem:[%s299 + $0x8] sm:$0xff]
      %v382 = vld [vmem:[%s299 + $0x10] sm:$0xff]
      %v383 = vld [vmem:[%s299 + $0x18] sm:$0xff]
      %v384 = vld [vmem:[%s299 + $0x20] sm:$0xff]
      %v385 = vld [vmem:[%s299 + $0x28] sm:$0xff]
      %v386 = vld [vmem:[%s299 + $0x30] sm:$0xff]
      %v387 = vld [vmem:[%s299 + $0x38] sm:$0xff]
      %v388 = vadd.f32 %v372, %v380
      %v389 = vadd.f32 %v373, %v381
      %v390 = vadd.f32 %v374, %v382
      %v391 = vadd.f32 %v375, %v383
      %v392 = vadd.f32 %v376, %v384
      %v393 = vadd.f32 %v377, %v385
      %v394 = vadd.f32 %v378, %v386
      %v395 = vadd.f32 %v379, %v387
      %vm396 = vcmask 130048
      %397 = vst.msk [vmem:[%s327] sm:$0xff] %vm396, %v388
      %398 = vst.msk [vmem:[%s327 + $0x8] sm:$0xff] %vm396, %v389
      %399 = vst.msk [vmem:[%s327 + $0x10] sm:$0xff] %vm396, %v390
      %400 = vst.msk [vmem:[%s327 + $0x18] sm:$0xff] %vm396, %v391
      %401 = vst.msk [vmem:[%s327 + $0x20] sm:$0xff] %vm396, %v392
      %402 = vst.msk [vmem:[%s327 + $0x28] sm:$0xff] %vm396, %v393
      %403 = vst.msk [vmem:[%s327 + $0x30] sm:$0xff] %vm396, %v394
      %404 = vst.msk [vmem:[%s327 + $0x38] sm:$0xff] %vm396, %v395
      %v405 = vld [vmem:[%s327] sm:$0xff]
      %v406 = vld [vmem:[%s327 + $0x8] sm:$0xff]
      %v407 = vld [vmem:[%s327 + $0x10] sm:$0xff]
      %v408 = vld [vmem:[%s327 + $0x18] sm:$0xff]
      %v409 = vld [vmem:[%s327 + $0x20] sm:$0xff]
      %v410 = vld [vmem:[%s327 + $0x28] sm:$0xff]
      %v411 = vld [vmem:[%s327 + $0x30] sm:$0xff]
      %v412 = vld [vmem:[%s327 + $0x38] sm:$0xff]
      %v413 = vsel %vm396, %v405, -inf
      %414 = vmax.xlane.f32.xlu0 %v413
      %v415 = vpop.xlane.xlu0 %414
      %v416 = vsel %vm396, %v406, -inf
      %417 = vmax.xlane.f32.xlu0 %v416
      %v418 = vpop.xlane.xlu0 %417
      %v419 = vsel %vm396, %v407, -inf
      %420 = vmax.xlane.f32.xlu0 %v419
      %v421 = vpop.xlane.xlu0 %420
      %v422 = vsel %vm396, %v408, -inf
      %423 = vmax.xlane.f32.xlu0 %v422
      %v424 = vpop.xlane.xlu0 %423
      %v425 = vsel %vm396, %v409, -inf
      %426 = vmax.xlane.f32.xlu0 %v425
      %v427 = vpop.xlane.xlu0 %426
      %v428 = vsel %vm396, %v410, -inf
      %429 = vmax.xlane.f32.xlu0 %v428
      %v430 = vpop.xlane.xlu0 %429
      %v431 = vsel %vm396, %v411, -inf
      %432 = vmax.xlane.f32.xlu0 %v431
      %v433 = vpop.xlane.xlu0 %432
      %v434 = vsel %vm396, %v412, -inf
      %435 = vmax.xlane.f32.xlu0 %v434
      %v436 = vpop.xlane.xlu0 %435
      %v437 = vsub.f32 %v405, %v415
      %v438 = vsub.f32 %v406, %v418
      %v439 = vsub.f32 %v407, %v421
      %v440 = vsub.f32 %v408, %v424
      %v441 = vsub.f32 %v409, %v427
      %v442 = vsub.f32 %v410, %v430
      %v443 = vsub.f32 %v411, %v433
      %v444 = vsub.f32 %v412, %v436
      %v445 = vmul.f32 %v437, 1.442695
      %v446 = vpow.pop %v445
      %v447 = vmul.f32 %v438, 1.442695
      %v448 = vpow.pop %v447
      %v449 = vmul.f32 %v439, 1.442695
      %v450 = vpow.pop %v449
      %v451 = vmul.f32 %v440, 1.442695
      %v452 = vpow.pop %v451
      %v453 = vmul.f32 %v441, 1.442695
      %v454 = vpow.pop %v453
      %v455 = vmul.f32 %v442, 1.442695
      %v456 = vpow.pop %v455
      %v457 = vmul.f32 %v443, 1.442695
      %v458 = vpow.pop %v457
      %v459 = vmul.f32 %v444, 1.442695
      %v460 = vpow.pop %v459
      %v461 = vsel %vm396, %v446, 0.0
      %462 = vadd.xlane.f32.xlu0 %v461
      %v463 = vpop.xlane.xlu0 %462
      %v464 = vsel %vm396, %v448, 0.0
      %465 = vadd.xlane.f32.xlu0 %v464
      %v466 = vpop.xlane.xlu0 %465
      %v467 = vsel %vm396, %v450, 0.0
      %468 = vadd.xlane.f32.xlu0 %v467
      %v469 = vpop.xlane.xlu0 %468
      %v470 = vsel %vm396, %v452, 0.0
      %471 = vadd.xlane.f32.xlu0 %v470
      %v472 = vpop.xlane.xlu0 %471
      %v473 = vsel %vm396, %v454, 0.0
      %474 = vadd.xlane.f32.xlu0 %v473
      %v475 = vpop.xlane.xlu0 %474
      %v476 = vsel %vm396, %v456, 0.0
      %477 = vadd.xlane.f32.xlu0 %v476
      %v478 = vpop.xlane.xlu0 %477
      %v479 = vsel %vm396, %v458, 0.0
      %480 = vadd.xlane.f32.xlu0 %v479
      %v481 = vpop.xlane.xlu0 %480
      %v482 = vsel %vm396, %v460, 0.0
      %483 = vadd.xlane.f32.xlu0 %v482
      %v484 = vpop.xlane.xlu0 %483
      %v485 = vrcp.pop %v463
      %v486 = vmul.f32 %v446, %v485
      %v487 = vrcp.pop %v466
      %v488 = vmul.f32 %v448, %v487
      %v489 = vrcp.pop %v469
      %v490 = vmul.f32 %v450, %v489
      %v491 = vrcp.pop %v472
      %v492 = vmul.f32 %v452, %v491
      %v493 = vrcp.pop %v475
      %v494 = vmul.f32 %v454, %v493
      %v495 = vrcp.pop %v478
      %v496 = vmul.f32 %v456, %v495
      %v497 = vrcp.pop %v481
      %v498 = vmul.f32 %v458, %v497
      %v499 = vrcp.pop %v484
      %v500 = vmul.f32 %v460, %v499
      %v501 = vld [vmem:[%s333] sm:$0xff]
      %v502 = vld [vmem:[%s333 + $0x8] sm:$0xff]
      %v503 = vld [vmem:[%s333 + $0x10] sm:$0xff]
      %v504 = vld [vmem:[%s333 + $0x18] sm:$0xff]
      %v505 = vld [vmem:[%s333 + $0x20] sm:$0xff]
      %v506 = vld [vmem:[%s333 + $0x28] sm:$0xff]
      %v507 = vld [vmem:[%s333 + $0x30] sm:$0xff]
      %v508 = vld [vmem:[%s333 + $0x38] sm:$0xff]
      %v509 = vsub.f32 %v486, %v501
      %v510 = vsub.f32 %v488, %v502
      %v511 = vsub.f32 %v490, %v503
      %v512 = vsub.f32 %v492, %v504
      %v513 = vsub.f32 %v494, %v505
      %v514 = vsub.f32 %v496, %v506
      %v515 = vsub.f32 %v498, %v507
      %v516 = vsub.f32 %v500, %v508
      %517 = vst.msk [vmem:[%s321] sm:$0xff] %vm396, %v509
      %518 = vst.msk [vmem:[%s321 + $0x8] sm:$0xff] %vm396, %v510
      %519 = vst.msk [vmem:[%s321 + $0x10] sm:$0xff] %vm396, %v511
      %520 = vst.msk [vmem:[%s321 + $0x18] sm:$0xff] %vm396, %v512
      %521 = vst.msk [vmem:[%s321 + $0x20] sm:$0xff] %vm396, %v513
      %522 = vst.msk [vmem:[%s321 + $0x28] sm:$0xff] %vm396, %v514
      %523 = vst.msk [vmem:[%s321 + $0x30] sm:$0xff] %vm396, %v515
      %524 = vst.msk [vmem:[%s321 + $0x38] sm:$0xff] %vm396, %v516
      %525 = vst.msk [vmem:[%s333] sm:$0xff] %vm396, %v486
      %526 = vst.msk [vmem:[%s333 + $0x8] sm:$0xff] %vm396, %v488
      %527 = vst.msk [vmem:[%s333 + $0x10] sm:$0xff] %vm396, %v490
      %528 = vst.msk [vmem:[%s333 + $0x18] sm:$0xff] %vm396, %v492
      %529 = vst.msk [vmem:[%s333 + $0x20] sm:$0xff] %vm396, %v494
      %530 = vst.msk [vmem:[%s333 + $0x28] sm:$0xff] %vm396, %v496
      %531 = vst.msk [vmem:[%s333 + $0x30] sm:$0xff] %vm396, %v498
      %532 = vst.msk [vmem:[%s333 + $0x38] sm:$0xff] %vm396, %v500
      %s533 = smul.u32 8, %s21
      %p534 = scmp.lt.s32.totalorder %s22, 3
      %s535 = scalar_select %p534, %s22, 3
      %p536 = scmp.lt.s32.totalorder %s533, 15
      %s537 = scalar_select %p536, %s533, 15
      %s538 = smul.addr %s535, 16
      %s539 = sadd.s32 %s537, %s538
      %s540 = smul.addr %s539, 8
      %s541 = scalar_lea.vmem %s3, %s540
      %s542 = smul.u32 8, %s21
      %p543 = scmp.lt.s32.totalorder %s542, 15
      %s544 = scalar_select %p543, %s542, 15
      %s545 = smul.addr %s544, 8
      %s546 = scalar_lea.vmem %s4, %s545
      %s547 = smul.u32 8, %s21
      %p548 = scmp.lt.s32.totalorder %s547, 15
      %s549 = scalar_select %p548, %s547, 15
      %s550 = smul.addr %s549, 8
      %s551 = scalar_lea.vmem %s5, %s550
      // Predicated region
      $region37: #{tpu_custom_call.1} parent=31 // pred_check
        %p552 = pneg %p129
      $region38: #{tpu_custom_call.1} parent=31 // pred_check_branch
        %554 = sbr.rel (%p552) target = $region40
      $region39: #{tpu_custom_call.1} parent=31 // pred_region
        %s555 = smul.u32 8, %s21
      $region40: #{tpu_custom_call.1} parent=31 // pred_fallthru
        _
      // Predicated region
      $region41: #{tpu_custom_call.1} parent=31 // pred_check
        %p556 = pneg %p155
      $region42: #{tpu_custom_call.1} parent=31 // pred_check_branch
        %558 = sbr.rel (%p556) target = $region44
      $region43: #{tpu_custom_call.1} parent=31 // pred_region
        %s559 = smul.u32 8, %s21
      $region44: #{tpu_custom_call.1} parent=31 // pred_fallthru
        _
      // Predicated region
      $region45: #{tpu_custom_call.1} parent=31 // pred_check
        %p560 = pneg %p181
      $region46: #{tpu_custom_call.1} parent=31 // pred_check_branch
        %562 = sbr.rel (%p560) target = $region48
      $region47: #{tpu_custom_call.1} parent=31 // pred_region
        %s563 = smul.u32 8, %s21
      $region48: #{tpu_custom_call.1} parent=31 // pred_fallthru
        _
    $region32: #{tpu_custom_call.1} parent=5 // pred_fallthru
      _
    %p564 = scmp.le.s32.totalorder 2, %s12
    // Predicated region
    $region49: #{tpu_custom_call.1} parent=5 // pred_check
      %p565 = pneg %p564
    $region50: #{tpu_custom_call.1} parent=5 // pred_check_branch
      %567 = sbr.rel (%p565) target = $region52
    $region51: #{tpu_custom_call.1} parent=5 // pred_region
      %s568 = ssub.s32 %s12, 2
      // Predicated region
      $region53: #{tpu_custom_call.1} parent=51 // pred_check
        %p569 = pneg %p135
      $region54: #{tpu_custom_call.1} parent=51 // pred_check_branch
        %571 = sbr.rel (%p569) target = $region56
      $region55: #{tpu_custom_call.1} parent=51 // pred_region
        %s572 = smul.u32 8, %s23
        %p573 = scmp.lt.s32.totalorder %s24, 3
        %s574 = scalar_select %p573, %s24, 3
        %p575 = scmp.lt.s32.totalorder %s572, 15
        %s576 = scalar_select %p575, %s572, 15
        %s577 = smul.addr %s574, 16
        %s578 = sadd.s32 %s576, %s577
        %s579 = smul.addr %s578, 8
        %s580 = scalar_lea.vmem %s3, %s579
      $region56: #{tpu_custom_call.1} parent=51 // pred_fallthru
        _
      // Predicated region
      $region57: #{tpu_custom_call.1} parent=51 // pred_check
        %p581 = pneg %p161
      $region58: #{tpu_custom_call.1} parent=51 // pred_check_branch
        %583 = sbr.rel (%p581) target = $region60
      $region59: #{tpu_custom_call.1} parent=51 // pred_region
        %s584 = smul.u32 8, %s23
        %p585 = scmp.lt.s32.totalorder %s584, 15
        %s586 = scalar_select %p585, %s584, 15
        %s587 = smul.addr %s586, 8
        %s588 = scalar_lea.vmem %s4, %s587
      $region60: #{tpu_custom_call.1} parent=51 // pred_fallthru
        _
      // Predicated region
      $region61: #{tpu_custom_call.1} parent=51 // pred_check
        %p589 = pneg %p187
      $region62: #{tpu_custom_call.1} parent=51 // pred_check_branch
        %591 = sbr.rel (%p589) target = $region64
      $region63: #{tpu_custom_call.1} parent=51 // pred_region
        %s592 = smul.u32 8, %s23
        %p593 = scmp.lt.s32.totalorder %s592, 15
        %s594 = scalar_select %p593, %s592, 15
        %s595 = smul.addr %s594, 8
        %s596 = scalar_lea.vmem %s5, %s595
      $region64: #{tpu_custom_call.1} parent=51 // pred_fallthru
        _
    $region52: #{tpu_custom_call.1} parent=5 // pred_fallthru
      _
  $region6: #{tpu_custom_call.1} parent=0 // loop_footer
    %s16 = sadd.s32 1, %s12
  $region7: #{tpu_custom_call.1} parent=0 // loop_footer_branch
    %11 = sbr.rel target = $region3
  $region8: #{tpu_custom_call.1} parent=0 // loop_exit
    _

</llo_original>
